<compile_context>
chip_gen: v5e
topology: v5e:2x2
jax: 0.10.0
libtpu: 0.0.40
codegen_flags: <defaults>
</compile_context>

<pallas_src>
import jax
import jax.numpy as jnp
from jax.experimental import pallas as pl
from jax.experimental.pallas import tpu as pltpu


def _lstm_cell_kernel(xh_ref, w_ref, b_ref, c_ref, h_out_ref, c_out_ref):
    H = c_ref.shape[-1]
    # Single fused (Bt, 2*In) @ (2*In, 4*H) matmul -> all gate pre-activations.
    z = jnp.dot(xh_ref[...], w_ref[...],
                preferred_element_type=jnp.float32) + b_ref[...]
    ingate = jax.nn.sigmoid(z[:, 0 * H:1 * H])
    forgetgate = jax.nn.sigmoid(z[:, 1 * H:2 * H])
    cellgate = jnp.tanh(z[:, 2 * H:3 * H])
    outgate = jax.nn.sigmoid(z[:, 3 * H:4 * H])
    c_new = forgetgate * c_ref[...] + ingate * cellgate
    c_out_ref[...] = c_new
    h_out_ref[...] = outgate * jnp.tanh(c_new)


def _pick_batch_block(B):
    # Largest power-of-two block (<=256) that evenly splits B into >=2 blocks;
    # otherwise a single block covering the whole batch.
    for cand in (256, 128, 64, 32, 16, 8):
        if B % cand == 0 and B >= 2 * cand:
            return cand
    return B


def lstm_cell_pallas(x, h, c, weight_ih, weight_hh, bias_ih, bias_hh):
    """Fused LSTMCell forward.

    x: (B, In)  h: (B, In)  c: (B, H)
    weight_ih / weight_hh: (4, In, H)   bias_ih / bias_hh: (4, H)
    returns (h_new, c_new), each (B, H) float32.
    """
    B, In = x.shape
    H = weight_ih.shape[-1]

    # ---- layout plumbing in plain JAX (outside the kernel) ----------------
    xh = jnp.concatenate([x, h], axis=-1)                        # (B, 2*In)
    w = jnp.concatenate(
        [weight_ih.transpose(1, 0, 2).reshape(In, 4 * H),
         weight_hh.transpose(1, 0, 2).reshape(In, 4 * H)],
        axis=0)                                                  # (2*In, 4*H)
    bias = (bias_ih + bias_hh).reshape(1, 4 * H)                 # (1, 4*H)

    bt = _pick_batch_block(B)
    grid = (B // bt,)
    # TODO(synk): for realistic sizes (In, H >= 512) cast xh/w to bf16 and
    # K-tile the 2*In reduction with an f32 accumulator + pl.when init so the
    # weight slab fits v7x's 64 MiB VMEM; keep weights resident across
    # timesteps when driving a sequence.

    return pl.pallas_call(
        _lstm_cell_kernel,
        out_shape=(jax.ShapeDtypeStruct((B, H), jnp.float32),
                   jax.ShapeDtypeStruct((B, H), jnp.float32)),
        grid=grid,
        in_specs=[
            pl.BlockSpec((bt, 2 * In), lambda b: (b, 0)),        # xh
            pl.BlockSpec((2 * In, 4 * H), lambda b: (0, 0)),     # fused weights
            pl.BlockSpec((1, 4 * H), lambda b: (0, 0)),          # fused bias
            pl.BlockSpec((bt, H), lambda b: (b, 0)),             # c
        ],
        out_specs=(pl.BlockSpec((bt, H), lambda b: (b, 0)),      # h_new
                   pl.BlockSpec((bt, H), lambda b: (b, 0))),     # c_new
        input_output_aliases={3: 1},                             # c -> c_new
        compiler_params=pltpu.CompilerParams(
            dimension_semantics=("parallel",)),
    )(xh, w, bias, c)


def lstm_cell_ref(x, h, c, weight_ih, weight_hh, bias_ih, bias_hh):
    ih = jnp.matmul(x, weight_ih) + bias_ih[:, None, :]          # (4, B, H)
    hh = jnp.matmul(h, weight_hh) + bias_hh[:, None, :]          # (4, B, H)
    g = ih + hh
    ingate, forgetgate, cellgate, outgate = (
        jax.nn.sigmoid(g[0]), jax.nn.sigmoid(g[1]),
        jnp.tanh(g[2]), jax.nn.sigmoid(g[3]))
    c_new = forgetgate * c + ingate * cellgate
    h_new = outgate * jnp.tanh(c_new)
    return h_new, c_new


if __name__ == "__main__":
    hidden_size = 32
    input_size = 32
    batch = 8

    key = jax.random.PRNGKey(0)
    k_wih, k_whh, k_bih, k_bhh, k_x, k_h, k_c = jax.random.split(key, 7)

    # Xavier-uniform-style init for the 3-D weights (harness only).
    fan_in = input_size * hidden_size
    fan_out = 4 * hidden_size
    bound = (6.0 / (fan_in + fan_out)) ** 0.5
    weight_ih = jax.random.uniform(k_wih, (4, input_size, hidden_size),
                                   jnp.float32, -bound, bound)
    weight_hh = jax.random.uniform(k_whh, (4, input_size, hidden_size),
                                   jnp.float32, -bound, bound)
    # Biases: torch.randn per gate in the module; stacked (4, H) here.
    bias_ih = jax.random.normal(k_bih, (4, hidden_size), jnp.float32)
    bias_hh = jax.random.normal(k_bhh, (4, hidden_size), jnp.float32)

    x = jax.random.normal(k_x, (batch, input_size), jnp.float32)
    h = jax.random.normal(k_h, (batch, input_size), jnp.float32)
    c = jax.random.normal(k_c, (batch, hidden_size), jnp.float32)

    # Reference first (pure JAX), then the fused Pallas kernel.
    h_ref, c_ref = lstm_cell_ref(x, h, c, weight_ih, weight_hh,
                                 bias_ih, bias_hh)
    h_out, c_out = jax.block_until_ready(
        lstm_cell_pallas(x, h, c, weight_ih, weight_hh, bias_ih, bias_hh))

    assert jnp.allclose(h_out, h_ref, atol=1e-4, rtol=1e-4)
    assert jnp.allclose(c_out, c_ref, atol=1e-4, rtol=1e-4)

    print("KERNEL_OK")
</pallas_src>

<mosaic_0001>
module attributes {stable_mosaic.version = 11 : i64} {
  func.func @_lstm_cell_kernel(%arg0: i32, %arg1: memref<8x64xf32, #tpu.memory_space<vmem>>, %arg2: memref<64x128xf32, #tpu.memory_space<vmem>>, %arg3: memref<1x128xf32, #tpu.memory_space<vmem>>, %arg4: memref<8x32xf32, #tpu.memory_space<vmem>>, %arg5: memref<8x32xf32, #tpu.memory_space<vmem>>, %arg6: memref<8x32xf32, #tpu.memory_space<vmem>>) attributes {dimension_semantics = [#tpu.dimension_semantics<parallel>], iteration_bounds = array<i64: 1>, scalar_prefetch = 0 : i64, scratch_operands = 0 : i64, tpu.core_type = #tpu.core_type<tc>, window_params = [{transform_indices = @transform_0, window_bounds = array<i64: 8, 64>}, {pipeline_mode = #tpu.pipeline_mode<synchronous>, transform_indices = @transform_1, window_bounds = array<i64: 64, 128>}, {pipeline_mode = #tpu.pipeline_mode<synchronous>, transform_indices = @transform_2, window_bounds = array<i64: 1, 128>}, {transform_indices = @transform_3, window_bounds = array<i64: 8, 32>}, {transform_indices = @transform_4, window_bounds = array<i64: 8, 32>}, {transform_indices = @transform_5, window_bounds = array<i64: 8, 32>}]} {
    %c0 = arith.constant 0 : index
    %c0_0 = arith.constant 0 : index
    %0 = vector.load %arg1[%c0, %c0_0] : memref<8x64xf32, #tpu.memory_space<vmem>>, vector<8x64xf32>
    %c0_1 = arith.constant 0 : index
    %c0_2 = arith.constant 0 : index
    %1 = vector.load %arg2[%c0_1, %c0_2] : memref<64x128xf32, #tpu.memory_space<vmem>>, vector<64x128xf32>
    %cst = arith.constant dense<0.000000e+00> : vector<8x128xf32>
    %2 = tpu.matmul %0, %1, %cst {dimension_numbers = #tpu.dot_dimension_numbers<[1], [0], [0], [1], [0, 0, 1, 1], [], []>} : vector<8x64xf32>, vector<64x128xf32>, vector<8x128xf32> -> vector<8x128xf32>
    %c0_3 = arith.constant 0 : index
    %c0_4 = arith.constant 0 : index
    %3 = vector.load %arg3[%c0_3, %c0_4] : memref<1x128xf32, #tpu.memory_space<vmem>>, vector<1x128xf32>
    %4 = vector.broadcast %3 : vector<1x128xf32> to vector<8x128xf32>
    %5 = arith.addf %2, %4 : vector<8x128xf32>
    %6 = vector.extract_strided_slice %5 {offsets = [0, 0], sizes = [8, 32], strides = [1, 1]} : vector<8x128xf32> to vector<8x32xf32>
    %7 = arith.negf %6 : vector<8x32xf32>
    %8 = math.exp %7 : vector<8x32xf32>
    %cst_5 = arith.constant 1.000000e+00 : f32
    %9 = vector.broadcast %cst_5 : f32 to vector<8x32xf32>
    %10 = arith.addf %9, %8 : vector<8x32xf32>
    %11 = arith.divf %9, %10 : vector<8x32xf32>
    %12 = vector.extract_strided_slice %5 {offsets = [0, 32], sizes = [8, 32], strides = [1, 1]} : vector<8x128xf32> to vector<8x32xf32>
    %13 = arith.negf %12 : vector<8x32xf32>
    %14 = math.exp %13 : vector<8x32xf32>
    %cst_6 = arith.constant 1.000000e+00 : f32
    %15 = vector.broadcast %cst_6 : f32 to vector<8x32xf32>
    %16 = arith.addf %15, %14 : vector<8x32xf32>
    %17 = arith.divf %15, %16 : vector<8x32xf32>
    %18 = vector.extract_strided_slice %5 {offsets = [0, 64], sizes = [8, 32], strides = [1, 1]} : vector<8x128xf32> to vector<8x32xf32>
    %19 = math.tanh %18 : vector<8x32xf32>
    %20 = vector.extract_strided_slice %5 {offsets = [0, 96], sizes = [8, 32], strides = [1, 1]} : vector<8x128xf32> to vector<8x32xf32>
    %21 = arith.negf %20 : vector<8x32xf32>
    %22 = math.exp %21 : vector<8x32xf32>
    %cst_7 = arith.constant 1.000000e+00 : f32
    %23 = vector.broadcast %cst_7 : f32 to vector<8x32xf32>
    %24 = arith.addf %23, %22 : vector<8x32xf32>
    %25 = arith.divf %23, %24 : vector<8x32xf32>
    %c0_8 = arith.constant 0 : index
    %c0_9 = arith.constant 0 : index
    %26 = vector.load %arg4[%c0_8, %c0_9] : memref<8x32xf32, #tpu.memory_space<vmem>>, vector<8x32xf32>
    %27 = arith.mulf %17, %26 : vector<8x32xf32>
    %28 = arith.mulf %11, %19 : vector<8x32xf32>
    %29 = arith.addf %27, %28 : vector<8x32xf32>
    %c0_10 = arith.constant 0 : index
    %c0_11 = arith.constant 0 : index
    %30 = vector.load %arg6[%c0_10, %c0_11] : memref<8x32xf32, #tpu.memory_space<vmem>>, vector<8x32xf32>
    tpu.vector_store %arg6[%c0_10, %c0_11], %29 {strides = array<i32>} : memref<8x32xf32, #tpu.memory_space<vmem>>, vector<8x32xf32>,
    %31 = math.tanh %29 : vector<8x32xf32>
    %32 = arith.mulf %25, %31 : vector<8x32xf32>
    %c0_12 = arith.constant 0 : index
    %c0_13 = arith.constant 0 : index
    %33 = vector.load %arg5[%c0_12, %c0_13] : memref<8x32xf32, #tpu.memory_space<vmem>>, vector<8x32xf32>
    tpu.vector_store %arg5[%c0_12, %c0_13], %32 {strides = array<i32>} : memref<8x32xf32, #tpu.memory_space<vmem>>, vector<8x32xf32>,
    return
  }
  func.func @transform_0(%arg0: i32) -> (i32, i32) {
    %c0_i32 = arith.constant 0 : i32
    %c0_i32_0 = arith.constant 0 : i32
    return %arg0, %c0_i32 : i32, i32
  }
  func.func @transform_1(%arg0: i32) -> (i32, i32) {
    %c0_i32 = arith.constant 0 : i32
    %c0_i32_0 = arith.constant 0 : i32
    %c0_i32_1 = arith.constant 0 : i32
    return %c0_i32, %c0_i32_0 : i32, i32
  }
  func.func @transform_2(%arg0: i32) -> (i32, i32) {
    %c0_i32 = arith.constant 0 : i32
    %c0_i32_0 = arith.constant 0 : i32
    %c0_i32_1 = arith.constant 0 : i32
    return %c0_i32, %c0_i32_0 : i32, i32
  }
  func.func @transform_3(%arg0: i32) -> (i32, i32) {
    %c0_i32 = arith.constant 0 : i32
    %c0_i32_0 = arith.constant 0 : i32
    return %arg0, %c0_i32 : i32, i32
  }
  func.func @transform_4(%arg0: i32) -> (i32, i32) {
    %c0_i32 = arith.constant 0 : i32
    %c0_i32_0 = arith.constant 0 : i32
    return %arg0, %c0_i32 : i32, i32
  }
  func.func @transform_5(%arg0: i32) -> (i32, i32) {
    %c0_i32 = arith.constant 0 : i32
    %c0_i32_0 = arith.constant 0 : i32
    return %arg0, %c0_i32 : i32, i32
  }
}

</mosaic_0001>

<llo_original>
// kernel: tpu_custom_call.1
$region0: #{tpu_custom_call.1}
  #allocation0 [shape = 'u32[]', space=smem, size = 0x4, offset = 0x4, fixed_abs, tag = 'smem constant byte address 0x4 - core index']
  #allocation1 [shape = 'u32[72,128]{1,0:T(1,128)}', space=vmem, size = 0x9000, scoped, tag = 'internal scratch']
  %s0 = inlined_call_operand.vmem [shape: f32[8,64], index: 0, kind: input, shape index: {}]
  %s1 = inlined_call_operand.hbm [shape: f32[64,128], index: 1, kind: input, shape index: {}]
  %s2 = inlined_call_operand.vmem [shape: f32[1,128], index: 2, kind: input, shape index: {}]
  %s3 = inlined_call_operand.hbm [shape: f32[8,32], index: 3, kind: input, shape index: {}, may-alias: {3,5}]
  %s4 = inlined_call_operand.hbm [shape: f32[8,32], index: 4, kind: output, shape index: {0}]
  %s5 = inlined_call_operand.hbm [shape: f32[8,32], index: 5, kind: output, shape index: {1}, may-alias: {3,5}]
  %6 = xla_tuple %s4, %s5
  %s7 = sld [smem:[#allocation0]]
  $region42: #{tpu_custom_call.1} parent=0
    _
  %s9 = ssub.s32 1, %s7
  %s10 = scalar_select 0, %s9, %s7
  $region1: #{tpu_custom_call.1} parent=0
    #allocation2 [shape = 'u8[32768]{0}', space=vmem, size = 0x8000, scoped, tag = 'input window, operand 1, single buffered']
    #allocation3 [shape = 's32[1]{0}', space=sflag, size = 0x4, scoped, tag = 'scoped memory for tpu_custom_call.1']
    #allocation4 [shape = 's32[1]{0}', space=sflag, size = 0x4, scoped, tag = 'scoped memory for tpu_custom_call.1']
    #allocation5 [shape = 'u8[4096]{0}', space=vmem, size = 0x1000, scoped, tag = 'input window, operand 3, single buffered']
    #allocation6 [shape = 's32[1]{0}', space=sflag, size = 0x4, scoped, tag = 'scoped memory for tpu_custom_call.1']
    #allocation7 [shape = 'u8[4096]{0}', space=vmem, size = 0x1000, scoped, tag = 'output window, operand 0, single buffered']
    #allocation8 [shape = 'u8[4096]{0}', space=vmem, size = 0x1000, scoped, tag = 'output window, operand 1, single buffered']
    #allocation9 [shape = 's32[1]{0}', space=sflag, size = 0x4, scoped, tag = 'scoped memory for tpu_custom_call.1']
    %11 = vsyncpa [#allocation3], 0
    %12 = vsyncpa [#allocation6], 0
    %13 = vsyncpa [#allocation4], 0
    %14 = vsyncpa [#allocation9], 0
    // Predicated region
    $region2: #{tpu_custom_call.1} parent=1 // pred_check
      _
    $region3: #{tpu_custom_call.1} parent=1 // pred_check_branch
      %16 = sbr.rel (0) target = $region5
    $region4: #{tpu_custom_call.1} parent=1 // pred_region
      _
    $region5: #{tpu_custom_call.1} parent=1 // pred_fallthru
      _
    // Predicated region
    $region6: #{tpu_custom_call.1} parent=1 // pred_check
      _
    $region7: #{tpu_custom_call.1} parent=1 // pred_check_branch
      %18 = sbr.rel (0) target = $region9
    $region8: #{tpu_custom_call.1} parent=1 // pred_region
      %20 = vsyncadd [#allocation3], 0
      %s21 = sshll.u32 %s1, 4
      %s22 = int_to_ptr.hbm [resolvable:$true] %s21
      %s23 = sshll.u32 [#allocation2], 4
      %s24 = int_to_ptr.vmem [resolvable:$true] %s23
      %29 = dma.hbm_to_vmem [thread:$0]  %s22, 1024, %s24, [#allocation3], 128, 128, 8
    $region9: #{tpu_custom_call.1} parent=1 // pred_fallthru
      _
    // Predicated region
    $region10: #{tpu_custom_call.1} parent=1 // pred_check
      _
    $region11: #{tpu_custom_call.1} parent=1 // pred_check_branch
      %31 = sbr.rel (0) target = $region13
    $region12: #{tpu_custom_call.1} parent=1 // pred_region
      _
    $region13: #{tpu_custom_call.1} parent=1 // pred_fallthru
      _
    // Predicated region
    $region14: #{tpu_custom_call.1} parent=1 // pred_check
      _
    $region15: #{tpu_custom_call.1} parent=1 // pred_check_branch
      %33 = sbr.rel (0) target = $region17
    $region16: #{tpu_custom_call.1} parent=1 // pred_region
      %35 = vsyncadd [#allocation6], 0
      %s37 = sshll.u32 %s3, 4
      %s38 = int_to_ptr.hbm [resolvable:$true] %s37
      %s39 = sshll.u32 [#allocation5], 4
      %s40 = int_to_ptr.vmem [resolvable:$true] %s39
      %42 = dma.hbm_to_vmem [thread:$0]  %s38, 128, %s40, [#allocation6]
    $region17: #{tpu_custom_call.1} parent=1 // pred_fallthru
      _
    // Predicated region
    $region18: #{tpu_custom_call.1} parent=1 // pred_check
      _
    $region19: #{tpu_custom_call.1} parent=1 // pred_check_branch
      %44 = sbr.rel (0) target = $region21
    $region20: #{tpu_custom_call.1} parent=1 // pred_region
      %46 = dma.done [#allocation3], 1024
    $region21: #{tpu_custom_call.1} parent=1 // pred_fallthru
      _
    // Predicated region
    $region22: #{tpu_custom_call.1} parent=1 // pred_check
      _
    $region23: #{tpu_custom_call.1} parent=1 // pred_check_branch
      %48 = sbr.rel (0) target = $region25
    $region24: #{tpu_custom_call.1} parent=1 // pred_region
      %50 = dma.done [#allocation6], 128
    $region25: #{tpu_custom_call.1} parent=1 // pred_fallthru
      _
    %v51 = vld [vmem:[%s0] sm:$0xff]
    %v52 = vld [vmem:[#allocation2] sm:$0xff]
    %v53 = vld [vmem:[#allocation2 + $0x8] sm:$0xff]
    %v54 = vld [vmem:[#allocation2 + $0x10] sm:$0xff]
    %v55 = vld [vmem:[#allocation2 + $0x18] sm:$0xff]
    %v56 = vld [vmem:[#allocation2 + $0x20] sm:$0xff]
    %v57 = vld [vmem:[#allocation2 + $0x28] sm:$0xff]
    %v58 = vld [vmem:[#allocation2 + $0x30] sm:$0xff]
    %v59 = vld [vmem:[#allocation2 + $0x38] sm:$0xff]
    %v60 = vld [vmem:[%s2] sm:$0x1]
    %v62 = vperm.slane %v60, 0
    %vm64 = vcmask 523264
    %v66 = vsel %vm64, %v51, 0
    %68 = vmatpush.msra.mxu0 0.0
    %69 = vmatpush.msra.mxu0 0.0
    %70 = vmatpush.msra.mxu0 0.0
    %71 = vmatpush.msra.mxu0 0.0
    %72 = vmatpush.msra.mxu0 0.0
    %73 = vmatpush.msra.mxu0 0.0
    %74 = vmatpush.msra.mxu0 0.0
    %75 = vmatpush.msra.mxu0 0.0
    %76 = vmatpush.msra.mxu0 %v59
    %77 = vmatpush.msra.mxu0 %v58
    %78 = vmatpush.msra.mxu0 %v57
    %79 = vmatpush.msra.mxu0 %v56
    %80 = vmatpush.msra.mxu0 %v55
    %81 = vmatpush.msra.mxu0 %v54
    %82 = vmatpush.msra.mxu0 %v53
    %83 = vmatpush.msra.mxu0 %v52
    %84 = vmatmul.f32.gmra.mxu0 %v66
    %v85 = vpop.f32.mrf.mxu0
    %v86 = vadd.f32 %v62, %v85
    %87 = vdwg.mxu0
    %v88 = vxor.u32 %v86, 2147483648
    %v89 = vmul.f32 %v88, 1.442695
    %v90 = vpow.pop %v89
    %v91 = vadd.f32 %v90, 1.0
    %v92 = vrcp.pop %v91
    %v93 = vmul.f32 %v91, %v92
    %v94 = vsub.f32 1.0, %v93
    %v95 = vmul.f32 %v92, %v94
    %v96 = vadd.f32 %v92, %v95
    %vm97 = vweird.f32 %v91
    %vm98 = vweird.f32 %v92
    %vm99 = vmor %vm97, %vm98
    %v100 = vsel %vm99, %v92, %v96
    %v101 = vand.u32 2147483647, %v91
    %vm102 = vcmp.eq.f32.partialorder %v101, 8.507059e+37
    %v103 = vand.u32 %v91, 2147483648
    %v104 = vor.u32 1.1754944e-38, %v103
    %v105 = vsel %vm102, %v104, %v100
    %v106 = vmul.f32 1.0, %v105
    %v107 = vtanh.pop %v86
    %v108 = vld [vmem:[#allocation5] sm:$0xff]
    %110 = vrot.lane.b32.xlu0 %v108, 32
    %v111 = vpop.permute.xlu0 %110
    %v113 = vmul.f32 %v106, %v111
    %115 = vrot.lane.b32.xlu0 %v107, 64
    %v116 = vpop.permute.xlu0 %115
    %v118 = vmul.f32 %v106, %v116
    %120 = vrot.lane.b32.xlu0 %v118, 32
    %v121 = vpop.permute.xlu0 %120
    %v123 = vadd.f32 %v113, %v121
    %125 = vrot.lane.b32.xlu0 %v123, 96
    %v126 = vpop.permute.xlu0 %125
    %vm128 = vcmask 261120
    %129 = vst.msk [vmem:[#allocation8] sm:$0xff] %vm128, %v126
    %v130 = vtanh.pop %v123
    %132 = vrot.lane.b32.xlu0 %v130, 64
    %v133 = vpop.permute.xlu0 %132
    %v135 = vmul.f32 %v106, %v133
    %137 = vrot.lane.b32.xlu0 %v135, 32
    %v138 = vpop.permute.xlu0 %137
    %140 = vst.msk [vmem:[#allocation7] sm:$0xff] %vm128, %v138
    // Predicated region
    $region26: #{tpu_custom_call.1} parent=1 // pred_check
      _
    $region27: #{tpu_custom_call.1} parent=1 // pred_check_branch
      %142 = sbr.rel (0) target = $region29
    $region28: #{tpu_custom_call.1} parent=1 // pred_region
      %144 = vsyncadd [#allocation4], 0
      %s146 = sshll.u32 [#allocation7], 4
      %s147 = int_to_ptr.vmem [resolvable:$true] %s146
      %s148 = sshll.u32 %s4, 4
      %s149 = int_to_ptr.hbm [resolvable:$true] %s148
      %151 = dma.vmem_to_hbm [thread:$0]  %s147, 128, %s149, [#allocation4]
    $region29: #{tpu_custom_call.1} parent=1 // pred_fallthru
      _
    // Predicated region
    $region30: #{tpu_custom_call.1} parent=1 // pred_check
      _
    $region31: #{tpu_custom_call.1} parent=1 // pred_check_branch
      %153 = sbr.rel (0) target = $region33
    $region32: #{tpu_custom_call.1} parent=1 // pred_region
      %155 = vsyncadd [#allocation9], 0
      %s157 = sshll.u32 [#allocation8], 4
      %s158 = int_to_ptr.vmem [resolvable:$true] %s157
      %s159 = sshll.u32 %s5, 4
      %s160 = int_to_ptr.hbm [resolvable:$true] %s159
      %162 = dma.vmem_to_hbm [thread:$0]  %s158, 128, %s160, [#allocation9]
    $region33: #{tpu_custom_call.1} parent=1 // pred_fallthru
      _
    // Predicated region
    $region34: #{tpu_custom_call.1} parent=1 // pred_check
      _
    $region35: #{tpu_custom_call.1} parent=1 // pred_check_branch
      %164 = sbr.rel (0) target = $region37
    $region36: #{tpu_custom_call.1} parent=1 // pred_region
      %166 = dma.done [#allocation4], 128
    $region37: #{tpu_custom_call.1} parent=1 // pred_fallthru
      _
    // Predicated region
    $region38: #{tpu_custom_call.1} parent=1 // pred_check
      _
    $region39: #{tpu_custom_call.1} parent=1 // pred_check_branch
      %168 = sbr.rel (0) target = $region41
    $region40: #{tpu_custom_call.1} parent=1 // pred_region
      %170 = dma.done [#allocation9], 128
    $region41: #{tpu_custom_call.1} parent=1 // pred_fallthru
      _
    %171 = vsyncpa [#allocation3], 1
    %172 = vsyncpa [#allocation6], 1
    %173 = vsyncpa [#allocation4], 1
    %174 = vsyncpa [#allocation9], 1

</llo_original>
